<compile_context>
chip_gen: v7x
topology: tpu7x:2x2x1
jax: 0.10.0
libtpu: 0.0.40
codegen_flags: <defaults>
</compile_context>

<pallas_src>
import functools

import jax
import jax.numpy as jnp
from jax import lax
from jax.experimental import pallas as pl

EPS = 1e-5


def _dilconv_bn_kernel(p_ref, w_ref, gamma_ref, beta_ref, out_ref, *, inv_n):
    # p_ref     : (K*K*C_in, Lp)   im2col patches (ReLU already applied), lane-padded with zeros
    # w_ref     : (C_out, K*K*C_in) folded depthwise*pointwise weights
    # gamma_ref : (C_out, 1)        BN affine scale
    # beta_ref  : (C_out, 1)        BN affine shift
    # out_ref   : (C_out, Lp)       normalized output (padded columns sliced off by wrapper)
    y = jnp.dot(w_ref[...], p_ref[...], preferred_element_type=jnp.float32)  # (C_out, Lp)

    # One-pass biased batch statistics over (N, H, W).  Padded lane columns of
    # the patch matrix are zero, hence the corresponding columns of y are zero
    # and do not perturb the sums; dividing by the true count (1/inv_n) is exact.
    s1 = jnp.sum(y, axis=1, keepdims=True)          # (C_out, 1)
    s2 = jnp.sum(y * y, axis=1, keepdims=True)      # (C_out, 1)
    mean = s1 * inv_n
    var = s2 * inv_n - mean * mean
    inv = lax.rsqrt(var + EPS)                      # EUP transcendental (free slot)

    # Fold BN affine: out = y*scale + shift  (2 VPU ops/elem instead of 4).
    scale = gamma_ref[...] * inv
    shift = beta_ref[...] - mean * scale
    out_ref[...] = y * scale + shift


def dilconv_forward(x_nchw, w_dw, w_pw, gamma, beta,
                    *, kernel_size, stride, padding, dilation):
    N, C_in, H, W = x_nchw.shape
    C_out = w_pw.shape[1]
    K = kernel_size
    eff_k = dilation * (K - 1) + 1
    Hp, Wp = H + 2 * padding, W + 2 * padding
    H_out = (Hp - eff_k) // stride + 1
    W_out = (Wp - eff_k) // stride + 1
    KKC = K * K * C_in
    L = N * H_out * W_out
    Lp = ((L + 127) // 128) * 128                   # lane-aligned output width

    # ReLU + spatial pad + im2col in the wrapper (XLA), so the kernel sees a
    # lane-aligned dense patch matrix with batch concatenated along lanes.
    xr = jnp.maximum(x_nchw.astype(jnp.float32), 0.0)
    xp = jnp.pad(xr, ((0, 0), (0, 0), (padding, padding), (padding, padding)))
    taps = []
    for kh in range(K):
        for kw in range(K):
            h0 = kh * dilation
            w0 = kw * dilation
            taps.append(xp[:, :,
                           h0:h0 + stride * (H_out - 1) + 1:stride,
                           w0:w0 + stride * (W_out - 1) + 1:stride])
    # (K*K, N, C_in, H_out, W_out) -> (K*K*C_in, N*H_out*W_out)
    patches = jnp.stack(taps, axis=0)
    patches = jnp.transpose(patches, (0, 2, 1, 3, 4)).reshape(KKC, L)
    patches = jnp.pad(patches, ((0, 0), (0, Lp - L)))          # zero lane padding

    # Fold depthwise + pointwise into one (C_out, K*K*C_in) matrix:
    # W[co, (kh*K+kw)*C_in + ci] = w_dw[kh, kw, ci] * w_pw[ci, co]
    w_eff = w_dw[:, :, :, None] * w_pw[None, None, :, :]        # (K, K, C_in, C_out)
    w_mat = jnp.transpose(w_eff, (3, 0, 1, 2)).reshape(C_out, KKC).astype(jnp.float32)

    flops = 2 * C_out * KKC * Lp + 8 * C_out * Lp
    bytes_accessed = 4 * (KKC * Lp + C_out * KKC + 2 * C_out + C_out * Lp)

    out_wide = pl.pallas_call(
        functools.partial(_dilconv_bn_kernel, inv_n=1.0 / float(L)),
        out_shape=jax.ShapeDtypeStruct((C_out, Lp), jnp.float32),
        cost_estimate=pl.CostEstimate(flops=flops, transcendentals=C_out,
                                      bytes_accessed=bytes_accessed),
    )(patches, w_mat,
      gamma.reshape(C_out, 1).astype(jnp.float32),
      beta.reshape(C_out, 1).astype(jnp.float32))
    # TODO(synk): for large N*H*W, add a "parallel" grid over lane blocks with a
    # sum/sumsq finalize step (BN stats couple all blocks) and set vmem_limit_bytes.

    # Drop padded lane columns; un-flatten back to NCHW.
    out = out_wide[:, :L].reshape(C_out, N, H_out, W_out)
    return jnp.transpose(out, (1, 0, 2, 3))


def reference(x_nchw, w_dw, w_pw, gamma, beta, *, stride, padding, dilation):
    x = jnp.transpose(jnp.maximum(x_nchw, 0.0), (0, 2, 3, 1))
    C_in = x.shape[-1]
    y = lax.conv_general_dilated(
        x, w_dw[:, :, None, :], window_strides=(stride, stride),
        padding=((padding, padding), (padding, padding)),
        rhs_dilation=(dilation, dilation),
        dimension_numbers=("NHWC", "HWIO", "NHWC"),
        feature_group_count=C_in)
    y = lax.conv_general_dilated(
        y, w_pw[None, None], window_strides=(1, 1), padding="VALID",
        dimension_numbers=("NHWC", "HWIO", "NHWC"))
    mean = jnp.mean(y, axis=(0, 1, 2), keepdims=True)
    var = jnp.var(y, axis=(0, 1, 2), keepdims=True)
    y = (y - mean) * lax.rsqrt(var + EPS) * gamma + beta
    return jnp.transpose(y, (0, 3, 1, 2))


if __name__ == "__main__":
    key = jax.random.PRNGKey(0)
    kx, kd, kp, kg, kb = jax.random.split(key, 5)

    # DilConv(C_in=4, C_out=8, kernel_size=3, stride=1, padding=2, dilation=2)
    N, C_in, C_out, H, W = 2, 4, 8, 16, 16
    K, stride, padding, dilation = 3, 1, 2, 2

    x = jax.random.normal(kx, (N, C_in, H, W), jnp.float32)
    w_dw = 0.3 * jax.random.normal(kd, (K, K, C_in), jnp.float32)      # depthwise
    w_pw = 0.3 * jax.random.normal(kp, (C_in, C_out), jnp.float32)     # pointwise
    gamma = 1.0 + 0.1 * jax.random.normal(kg, (C_out,), jnp.float32)   # BN affine
    beta = 0.1 * jax.random.normal(kb, (C_out,), jnp.float32)

    out = dilconv_forward(x, w_dw, w_pw, gamma, beta,
                          kernel_size=K, stride=stride,
                          padding=padding, dilation=dilation)
    out = jax.block_until_ready(out)

    ref = reference(x, w_dw, w_pw, gamma, beta,
                    stride=stride, padding=padding, dilation=dilation)
    assert out.shape == (N, C_out, H, W)
    assert jnp.allclose(out, ref, rtol=1e-4, atol=1e-4), \
        float(jnp.max(jnp.abs(out - ref)))
    print("KERNEL_OK")
</pallas_src>

<mosaic_0001>
module attributes {stable_mosaic.version = 11 : i64} {
  func.func @_dilconv_bn_kernel(%arg0: memref<36x512xf32, #tpu.memory_space<vmem>>, %arg1: memref<8x36xf32, #tpu.memory_space<vmem>>, %arg2: memref<8x1xf32, #tpu.memory_space<vmem>>, %arg3: memref<8x1xf32, #tpu.memory_space<vmem>>, %arg4: memref<8x512xf32, #tpu.memory_space<vmem>>) attributes {dimension_semantics = [], scalar_prefetch = 0 : i64, scratch_operands = 0 : i64, tpu.core_type = #tpu.core_type<tc>} {
    %c0 = arith.constant 0 : index
    %c0_0 = arith.constant 0 : index
    %0 = vector.load %arg1[%c0, %c0_0] : memref<8x36xf32, #tpu.memory_space<vmem>>, vector<8x36xf32>
    %c0_1 = arith.constant 0 : index
    %c0_2 = arith.constant 0 : index
    %1 = vector.load %arg0[%c0_1, %c0_2] : memref<36x512xf32, #tpu.memory_space<vmem>>, vector<36x512xf32>
    %cst = arith.constant dense<0.000000e+00> : vector<8x512xf32>
    %2 = tpu.matmul %0, %1, %cst {dimension_numbers = #tpu.dot_dimension_numbers<[1], [0], [0], [1], [0, 0, 1, 1], [], []>} : vector<8x36xf32>, vector<36x512xf32>, vector<8x512xf32> -> vector<8x512xf32>
    %cst_3 = arith.constant dense<0.000000e+00> : vector<8xf32>
    %3 = vector.multi_reduction <add>, %2, %cst_3 [1] : vector<8x512xf32> to vector<8xf32>
    %4 = vector.shape_cast %3 : vector<8xf32> to vector<8x1xf32>
    %5 = arith.mulf %2, %2 : vector<8x512xf32>
    %cst_4 = arith.constant dense<0.000000e+00> : vector<8xf32>
    %6 = vector.multi_reduction <add>, %5, %cst_4 [1] : vector<8x512xf32> to vector<8xf32>
    %7 = vector.shape_cast %6 : vector<8xf32> to vector<8x1xf32>
    %cst_5 = arith.constant 0.001953125 : f32
    %8 = vector.broadcast %cst_5 : f32 to vector<8x1xf32>
    %9 = arith.mulf %4, %8 : vector<8x1xf32>
    %cst_6 = arith.constant 0.001953125 : f32
    %10 = vector.broadcast %cst_6 : f32 to vector<8x1xf32>
    %11 = arith.mulf %7, %10 : vector<8x1xf32>
    %12 = arith.mulf %9, %9 : vector<8x1xf32>
    %13 = arith.subf %11, %12 : vector<8x1xf32>
    %cst_7 = arith.constant 9.99999974E-6 : f32
    %14 = vector.broadcast %cst_7 : f32 to vector<8x1xf32>
    %15 = arith.addf %13, %14 : vector<8x1xf32>
    %16 = math.rsqrt %15 : vector<8x1xf32>
    %c0_8 = arith.constant 0 : index
    %c0_9 = arith.constant 0 : index
    %17 = vector.load %arg2[%c0_8, %c0_9] : memref<8x1xf32, #tpu.memory_space<vmem>>, vector<8x1xf32>
    %18 = arith.mulf %17, %16 : vector<8x1xf32>
    %c0_10 = arith.constant 0 : index
    %c0_11 = arith.constant 0 : index
    %19 = vector.load %arg3[%c0_10, %c0_11] : memref<8x1xf32, #tpu.memory_space<vmem>>, vector<8x1xf32>
    %20 = arith.mulf %9, %18 : vector<8x1xf32>
    %21 = arith.subf %19, %20 : vector<8x1xf32>
    %22 = vector.broadcast %18 : vector<8x1xf32> to vector<8x512xf32>
    %23 = arith.mulf %2, %22 : vector<8x512xf32>
    %24 = vector.broadcast %21 : vector<8x1xf32> to vector<8x512xf32>
    %25 = arith.addf %23, %24 : vector<8x512xf32>
    %c0_12 = arith.constant 0 : index
    %c0_13 = arith.constant 0 : index
    %26 = vector.load %arg4[%c0_12, %c0_13] : memref<8x512xf32, #tpu.memory_space<vmem>>, vector<8x512xf32>
    tpu.vector_store %arg4[%c0_12, %c0_13], %25 {strides = array<i32>} : memref<8x512xf32, #tpu.memory_space<vmem>>, vector<8x512xf32>,
    return
  }
}

</mosaic_0001>

<llo_original>
// kernel: tpu_custom_call.1
$region0: #{tpu_custom_call.1}
  #allocation0 [shape = 'u32[]', space=smem, size = 0x4, offset = 0x4, fixed_abs, tag = 'smem constant byte address 0x4 - core index']
  #allocation1 [shape = 'u32[144,128]{1,0:T(1,128)}', space=vmem, size = 0x12000, scoped, tag = 'internal scratch']
  %s0 = inlined_call_operand.hbm [shape: f32[36,512], index: 0, kind: input, shape index: {}]
  %s1 = inlined_call_operand.vmem [shape: f32[8,36], index: 1, kind: input, shape index: {}]
  %s2 = inlined_call_operand.vmem [shape: f32[8,1], index: 2, kind: input, shape index: {}]
  %s3 = inlined_call_operand.vmem [shape: f32[8,1], index: 3, kind: input, shape index: {}]
  %s4 = inlined_call_operand.hbm [shape: f32[8,512], index: 4, kind: output, shape index: {}]
  %s5 = sld [smem:[#allocation0]]
  $region30: #{tpu_custom_call.1} parent=0
    _
  %s7 = ssub.s32 1, %s5
  %s8 = scalar_select 0, %s7, %s5
  $region1: #{tpu_custom_call.1} parent=0
    #allocation2 [shape = 'u8[81920]{0}', space=vmem, size = 0x14000, scoped, tag = 'input window, operand 0, single buffered']
    #allocation3 [shape = 's32[1]{0}', space=sflag, size = 0x4, scoped, tag = 'scoped memory for tpu_custom_call.1']
    #allocation4 [shape = 's32[1]{0}', space=sflag, size = 0x4, scoped, tag = 'scoped memory for tpu_custom_call.1']
    #allocation5 [shape = 'u8[16384]{0}', space=vmem, size = 0x4000, scoped, tag = 'output window, operand 0, single buffered']
    %9 = vsyncpa [#allocation3], 0
    %10 = vsyncpa [#allocation4], 0
    // Predicated region
    $region2: #{tpu_custom_call.1} parent=1 // pred_check
      _
    $region3: #{tpu_custom_call.1} parent=1 // pred_check_branch
      %12 = sbr.rel (0) target = $region5
    $region4: #{tpu_custom_call.1} parent=1 // pred_region
      %s14 = ssub.s32 2560, 2560
      %15 = vsyncadd [#allocation3], %s14
      %s16 = sshll.u32 [#allocation2], 4
      %s17 = int_to_ptr.vmem [resolvable:$true] %s16
      %22 = dma.hbm_to_vmem [thread:$0]  %s0, 2560, %s17, [#allocation3], 512, 512, 32
    $region5: #{tpu_custom_call.1} parent=1 // pred_fallthru
      _
    // Predicated region
    $region6: #{tpu_custom_call.1} parent=1 // pred_check
      _
    $region7: #{tpu_custom_call.1} parent=1 // pred_check_branch
      %24 = sbr.rel (0) target = $region9
    $region8: #{tpu_custom_call.1} parent=1 // pred_region
      _
    $region9: #{tpu_custom_call.1} parent=1 // pred_fallthru
      _
    // Predicated region
    $region10: #{tpu_custom_call.1} parent=1 // pred_check
      _
    $region11: #{tpu_custom_call.1} parent=1 // pred_check_branch
      %26 = sbr.rel (0) target = $region13
    $region12: #{tpu_custom_call.1} parent=1 // pred_region
      _
    $region13: #{tpu_custom_call.1} parent=1 // pred_fallthru
      _
    // Predicated region
    $region14: #{tpu_custom_call.1} parent=1 // pred_check
      _
    $region15: #{tpu_custom_call.1} parent=1 // pred_check_branch
      %28 = sbr.rel (0) target = $region17
    $region16: #{tpu_custom_call.1} parent=1 // pred_region
      _
    $region17: #{tpu_custom_call.1} parent=1 // pred_fallthru
      _
    // Predicated region
    $region18: #{tpu_custom_call.1} parent=1 // pred_check
      _
    $region19: #{tpu_custom_call.1} parent=1 // pred_check_branch
      %30 = sbr.rel (0) target = $region21
    $region20: #{tpu_custom_call.1} parent=1 // pred_region
      %31 = dma.done [#allocation3], 2560
    $region21: #{tpu_custom_call.1} parent=1 // pred_fallthru
      _
    %v32 = vld [vmem:[%s1] sm:$0xff]
    %v33 = vld [vmem:[#allocation2] sm:$0xff]
    %v34 = vld [vmem:[#allocation2 + $0x8] sm:$0xff]
    %v35 = vld [vmem:[#allocation2 + $0x10] sm:$0xff]
    %v36 = vld [vmem:[#allocation2 + $0x18] sm:$0xff]
    %v37 = vld [vmem:[#allocation2 + $0x20] sm:$0xff]
    %v38 = vld [vmem:[#allocation2 + $0x28] sm:$0xff]
    %v39 = vld [vmem:[#allocation2 + $0x30] sm:$0xff]
    %v40 = vld [vmem:[#allocation2 + $0x38] sm:$0xff]
    %v41 = vld [vmem:[#allocation2 + $0x40] sm:$0xff]
    %v42 = vld [vmem:[#allocation2 + $0x48] sm:$0xff]
    %v43 = vld [vmem:[#allocation2 + $0x50] sm:$0xff]
    %v44 = vld [vmem:[#allocation2 + $0x58] sm:$0xff]
    %v45 = vld [vmem:[#allocation2 + $0x60] sm:$0xff]
    %v46 = vld [vmem:[#allocation2 + $0x68] sm:$0xff]
    %v47 = vld [vmem:[#allocation2 + $0x70] sm:$0xff]
    %v48 = vld [vmem:[#allocation2 + $0x78] sm:$0xff]
    %v49 = vld [vmem:[#allocation2 + $0x80] sm:$0xf]
    %v50 = vld [vmem:[#allocation2 + $0x88] sm:$0xf]
    %v51 = vld [vmem:[#allocation2 + $0x90] sm:$0xf]
    %v52 = vld [vmem:[#allocation2 + $0x98] sm:$0xf]
    %vm53 = vcmask 293888
    %v55 = vsel %vm53, %v32, 0
    %vm57 = vcmask 1043456
    %v59 = vsel %vm57, %v49, 0
    %v62 = vsel %vm57, %v50, 0
    %v65 = vsel %vm57, %v51, 0
    %v68 = vsel %vm57, %v52, 0
    %70 = vmatprep.subr.mxu0 %v34
    %71 = vmatpush1.msra.mxu0 %v33
    %72 = vmatprep.subr.mxu0 %v38
    %73 = vmatpush1.msra.mxu0 %v37
    %74 = vmatprep.subr.mxu0 %v42
    %75 = vmatpush1.msra.mxu0 %v41
    %76 = vmatprep.subr.mxu0 %v46
    %77 = vmatpush1.msra.mxu0 %v45
    %78 = vmatprep.subr.mxu0 %v62
    %79 = vmatpush1.msra.mxu0 %v59
    %80 = vmatprep.subr.mxu0 0.0
    %81 = vmatpush1.msra.mxu0 0.0
    %82 = vmatprep.subr.mxu0 0.0
    %83 = vmatpush1.msra.mxu0 0.0
    %84 = vmatprep.subr.mxu0 0.0
    %85 = vmatpush1.msra.mxu0 0.0
    %86 = vmatprep.subr.mxu0 0.0
    %87 = vmatpush1.msra.mxu0 0.0
    %88 = vmatprep.subr.mxu0 0.0
    %89 = vmatpush1.msra.mxu0 0.0
    %90 = vmatprep.subr.mxu0 0.0
    %91 = vmatpush1.msra.mxu0 0.0
    %92 = vmatprep.subr.mxu0 0.0
    %93 = vmatpush1.msra.mxu0 0.0
    %94 = vmatprep.subr.mxu0 0.0
    %95 = vmatpush1.msra.mxu0 0.0
    %96 = vmatprep.subr.mxu0 0.0
    %97 = vmatpush1.msra.mxu0 0.0
    %98 = vmatprep.subr.mxu0 0.0
    %99 = vmatpush1.msra.mxu0 0.0
    %100 = vmatprep.subr.mxu0 0.0
    %101 = vmatpush1.msra.mxu0 0.0
    %102 = vmatprep.subr.mxu0 0.0
    %103 = vmatpush1.msra.mxu0 0.0
    %104 = vmatprep.subr.mxu0 0.0
    %105 = vmatpush1.msra.mxu0 0.0
    %106 = vmatprep.subr.mxu0 0.0
    %107 = vmatpush1.msra.mxu0 0.0
    %108 = vmatprep.subr.mxu0 0.0
    %109 = vmatpush1.msra.mxu0 0.0
    %110 = vmatprep.subr.mxu0 0.0
    %111 = vmatpush1.msra.mxu0 0.0
    %112 = vmatprep.subr.mxu0 0.0
    %113 = vmatpush1.msra.mxu0 0.0
    %114 = vmatprep.subr.mxu0 0.0
    %115 = vmatpush1.msra.mxu0 0.0
    %116 = vmatprep.subr.mxu0 0.0
    %117 = vmatpush1.msra.mxu0 0.0
    %118 = vmatprep.subr.mxu0 0.0
    %119 = vmatpush1.msra.mxu0 0.0
    %120 = vmatprep.subr.mxu0 0.0
    %121 = vmatpush1.msra.mxu0 0.0
    %122 = vmatprep.subr.mxu0 0.0
    %123 = vmatpush1.msra.mxu0 0.0
    %124 = vmatprep.subr.mxu0 0.0
    %125 = vmatpush1.msra.mxu0 0.0
    %126 = vmatprep.subr.mxu0 0.0
    %127 = vmatpush1.msra.mxu0 0.0
    %128 = vmatprep.subr.mxu0 0.0
    %129 = vmatpush1.msra.mxu0 0.0
    %130 = vmatprep.subr.mxu0 0.0
    %131 = vmatpush1.msra.mxu0 0.0
    %132 = vmatprep.subr.mxu0 0.0
    %133 = vmatpush1.msra.mxu0 0.0
    %134 = vmatprep.mubr.f32.mxu0 0.0
    %135 = vmatmul.mubr.f32.gmra.mrb[0].mxu0 %v55
    %v136 = vpop.f32.mrb[0].mxu0
    %v137 = vadd.f32 0.0, %v136
    %v138 = vpop.f32.mrb[0].mxu0
    %v139 = vadd.f32 0.0, %v138
    %140 = vdwg.mxu0
    %141 = vmatprep.subr.mxu0 %v36
    %142 = vmatpush1.msra.mxu0 %v35
    %143 = vmatprep.subr.mxu0 %v40
    %144 = vmatpush1.msra.mxu0 %v39
    %145 = vmatprep.subr.mxu0 %v44
    %146 = vmatpush1.msra.mxu0 %v43
    %147 = vmatprep.subr.mxu0 %v48
    %148 = vmatpush1.msra.mxu0 %v47
    %149 = vmatprep.subr.mxu0 %v68
    %150 = vmatpush1.msra.mxu0 %v65
    %151 = vmatprep.subr.mxu0 0.0
    %152 = vmatpush1.msra.mxu0 0.0
    %153 = vmatprep.subr.mxu0 0.0
    %154 = vmatpush1.msra.mxu0 0.0
    %155 = vmatprep.subr.mxu0 0.0
    %156 = vmatpush1.msra.mxu0 0.0
    %157 = vmatprep.subr.mxu0 0.0
    %158 = vmatpush1.msra.mxu0 0.0
    %159 = vmatprep.subr.mxu0 0.0
    %160 = vmatpush1.msra.mxu0 0.0
    %161 = vmatprep.subr.mxu0 0.0
    %162 = vmatpush1.msra.mxu0 0.0
    %163 = vmatprep.subr.mxu0 0.0
    %164 = vmatpush1.msra.mxu0 0.0
    %165 = vmatprep.subr.mxu0 0.0
    %166 = vmatpush1.msra.mxu0 0.0
    %167 = vmatprep.subr.mxu0 0.0
    %168 = vmatpush1.msra.mxu0 0.0
    %169 = vmatprep.subr.mxu0 0.0
    %170 = vmatpush1.msra.mxu0 0.0
    %171 = vmatprep.subr.mxu0 0.0
    %172 = vmatpush1.msra.mxu0 0.0
    %173 = vmatprep.subr.mxu0 0.0
    %174 = vmatpush1.msra.mxu0 0.0
    %175 = vmatprep.subr.mxu0 0.0
    %176 = vmatpush1.msra.mxu0 0.0
    %177 = vmatprep.subr.mxu0 0.0
    %178 = vmatpush1.msra.mxu0 0.0
    %179 = vmatprep.subr.mxu0 0.0
    %180 = vmatpush1.msra.mxu0 0.0
    %181 = vmatprep.subr.mxu0 0.0
    %182 = vmatpush1.msra.mxu0 0.0
    %183 = vmatprep.subr.mxu0 0.0
    %184 = vmatpush1.msra.mxu0 0.0
    %185 = vmatprep.subr.mxu0 0.0
    %186 = vmatpush1.msra.mxu0 0.0
    %187 = vmatprep.subr.mxu0 0.0
    %188 = vmatpush1.msra.mxu0 0.0
    %189 = vmatprep.subr.mxu0 0.0
    %190 = vmatpush1.msra.mxu0 0.0
    %191 = vmatprep.subr.mxu0 0.0
    %192 = vmatpush1.msra.mxu0 0.0
    %193 = vmatprep.subr.mxu0 0.0
    %194 = vmatpush1.msra.mxu0 0.0
    %195 = vmatprep.subr.mxu0 0.0
    %196 = vmatpush1.msra.mxu0 0.0
    %197 = vmatprep.subr.mxu0 0.0
    %198 = vmatpush1.msra.mxu0 0.0
    %199 = vmatprep.subr.mxu0 0.0
    %200 = vmatpush1.msra.mxu0 0.0
    %201 = vmatprep.subr.mxu0 0.0
    %202 = vmatpush1.msra.mxu0 0.0
    %203 = vmatprep.subr.mxu0 0.0
    %204 = vmatpush1.msra.mxu0 0.0
    %205 = vmatprep.mubr.f32.mxu0 0.0
    %206 = vmatmul.mubr.f32.gmra.mrb[0].mxu0 %v55
    %v207 = vpop.f32.mrb[0].mxu0
    %v208 = vadd.f32 0.0, %v207
    %v209 = vpop.f32.mrb[0].mxu0
    %v210 = vadd.f32 0.0, %v209
    %211 = vdwg.mxu0
    %v212 = vadd.f32 %v137, %v139
    %v213 = vadd.f32 %v212, %v208
    %v214 = vadd.f32 %v213, %v210
    %215 = vadd.xlane.f32.xlu0 %v214
    %v216 = vpop.xlane.xlu0 %215
    %v217 = vmul.f32 %v137, %v137
    %v218 = vmul.f32 %v139, %v139
    %v219 = vmul.f32 %v208, %v208
    %v220 = vmul.f32 %v210, %v210
    %v221 = vadd.f32 %v217, %v218
    %v222 = vadd.f32 %v221, %v219
    %v223 = vadd.f32 %v222, %v220
    %224 = vadd.xlane.f32.xlu0 %v223
    %v225 = vpop.xlane.xlu0 %224
    %v226 = vmul.f32 %v216, 0.001953125
    %v227 = vmul.f32 %v225, 0.001953125
    %v228 = vmul.f32 %v226, %v226
    %v229 = vsub.f32 %v227, %v228
    %v230 = vadd.f32 %v229, 1e-05
    %v231 = vrsqrt.pop %v230
    %v232 = vld [vmem:[%s2] sm:$0xff]
    %v233 = vmul.f32 %v232, %v231
    %v234 = vld [vmem:[%s3] sm:$0xff]
    %v235 = vmul.f32 %v226, %v233
    %v236 = vsub.f32 %v234, %v235
    %238 = vset.pattern.permute.xlu0 0
    %239 = vperm.xlu0 %238, %v233
    %v240 = vpop.permute.xlu0 %239
    %v242 = vmul.f32 %v137, %v240
    %v243 = vmul.f32 %v139, %v240
    %v244 = vmul.f32 %v208, %v240
    %v245 = vmul.f32 %v210, %v240
    %247 = vset.pattern.permute.xlu0 0
    %248 = vperm.xlu0 %247, %v236
    %v249 = vpop.permute.xlu0 %248
    %v251 = vadd.f32 %v242, %v249
    %v252 = vadd.f32 %v243, %v249
    %v253 = vadd.f32 %v244, %v249
    %v254 = vadd.f32 %v245, %v249
    %255 = vst [vmem:[#allocation5] sm:$0xff] %v251
    %256 = vst [vmem:[#allocation5 + $0x8] sm:$0xff] %v252
    %257 = vst [vmem:[#allocation5 + $0x10] sm:$0xff] %v253
    %258 = vst [vmem:[#allocation5 + $0x18] sm:$0xff] %v254
    // Predicated region
    $region22: #{tpu_custom_call.1} parent=1 // pred_check
      _
    $region23: #{tpu_custom_call.1} parent=1 // pred_check_branch
      %260 = sbr.rel (0) target = $region25
    $region24: #{tpu_custom_call.1} parent=1 // pred_region
      %s262 = ssub.s32 512, 512
      %263 = vsyncadd [#allocation4], %s262
      %s265 = sshll.u32 [#allocation5], 4
      %s266 = int_to_ptr.vmem [resolvable:$true] %s265
      %268 = dma.vmem_to_hbm [thread:$0]  %s266, 512, %s4, [#allocation4]
    $region25: #{tpu_custom_call.1} parent=1 // pred_fallthru
      _
    // Predicated region
    $region26: #{tpu_custom_call.1} parent=1 // pred_check
      _
    $region27: #{tpu_custom_call.1} parent=1 // pred_check_branch
      %270 = sbr.rel (0) target = $region29
    $region28: #{tpu_custom_call.1} parent=1 // pred_region
      %271 = dma.done [#allocation4], 512
    $region29: #{tpu_custom_call.1} parent=1 // pred_fallthru
      _
    %272 = vsyncpa [#allocation3], 1
    %273 = vsyncpa [#allocation4], 1

</llo_original>
